<compile_context>
chip_gen: v6e
topology: v6e:2x2x1
jax: 0.10.0
libtpu: 0.0.40
codegen_flags: <defaults>
</compile_context>

<pallas_src>
import jax
import jax.numpy as jnp
from jax import lax
from jax.experimental import pallas as pl
from jax.experimental.pallas import tpu as pltpu


def deeponet_kernel(u_ref, y_ref,
                    bw1_ref, bb1_ref, bw2_ref, bb2_ref,
                    tw1_ref, tb1_ref, tw2_ref, tb2_ref,
                    bias_ref, o_ref):
    # ---- trunk MLP: [tn, trunk_in] -> tanh -> [tn, p]  (cheap; hidden under DMA)
    h_t = jnp.tanh(
        jnp.dot(y_ref[...], tw1_ref[...], preferred_element_type=jnp.float32)
        + tb1_ref[...]
    )
    trunk_out = (
        jnp.dot(h_t, tw2_ref[...], preferred_element_type=jnp.float32)
        + tb2_ref[...]
    )

    # ---- branch MLP: [tb, branch_in] -> tanh -> [tb, p] ----
    h_b = jnp.tanh(
        jnp.dot(u_ref[...], bw1_ref[...], preferred_element_type=jnp.float32)
        + bb1_ref[...]
    )
    branch_out = (
        jnp.dot(h_b, bw2_ref[...], preferred_element_type=jnp.float32)
        + bb2_ref[...]
    )

    # ---- DeepONet contraction over p: [tb, p] x [tn, p] -> [tb, tn] ----
    # Contract on dim 1 of both operands (A @ B.T); no explicit transpose.
    out = lax.dot_general(
        branch_out, trunk_out,
        dimension_numbers=(((1,), (1,)), ((), ())),
        preferred_element_type=jnp.float32,
    )

    # scalar bias (nn.Parameter(torch.zeros(1))) lives in SMEM as (1, 1)
    o_ref[...] = out + bias_ref[0, 0]


def _round_up(x, m):
    return ((x + m - 1) // m) * m


def deeponet_forward(u, y, params, *, tb=512, tn=2048):
    """DeepONet forward (2D y path). Returns [B, N] float32."""
    (bw1, bb1, bw2, bb2, tw1, tb1, tw2, tb2, bias) = params
    B, branch_in = u.shape
    N, trunk_in = y.shape

    # Shrink tiles for small problems; keep (8, 128) sublane/lane alignment.
    # Block shapes need not divide (B, N): pl.cdiv grid + masked edge blocks.
    tb = min(tb, _round_up(B, 8))
    tn = min(tn, _round_up(N, 128))

    bias2d = jnp.reshape(bias, (1, 1)).astype(jnp.float32)

    grid = (pl.cdiv(B, tb), pl.cdiv(N, tn))   # (B-tiles, N-tiles), both parallel

    const_map = lambda b, n: (0, 0)
    full_vmem = lambda arr: pl.BlockSpec(arr.shape, const_map)

    out = pl.pallas_call(
        deeponet_kernel,
        out_shape=jax.ShapeDtypeStruct((B, N), jnp.float32),
        grid_spec=pltpu.PrefetchScalarGridSpec(
            num_scalar_prefetch=0,
            grid=grid,
            in_specs=[
                pl.BlockSpec((tb, branch_in), lambda b, n: (b, 0)),   # u tile
                pl.BlockSpec((tn, trunk_in), lambda b, n: (n, 0)),    # y tile
                full_vmem(bw1), full_vmem(bb1),                       # branch L1
                full_vmem(bw2), full_vmem(bb2),                       # branch L2
                full_vmem(tw1), full_vmem(tb1),                       # trunk L1
                full_vmem(tw2), full_vmem(tb2),                       # trunk L2
                pl.BlockSpec((1, 1), const_map,
                             memory_space=pltpu.MemorySpace.SMEM),    # scalar bias
            ],
            out_specs=pl.BlockSpec((tb, tn), lambda b, n: (b, n)),
        ),
        compiler_params=pltpu.CompilerParams(
            dimension_semantics=("parallel", "parallel"),
            # Headroom for the larger tiles; 48 MiB is valid on v5e/v6e (128 MiB
            # physical) and v7x (64 MiB physical). Actual footprint ~9 MiB.
            vmem_limit_bytes=48 * 1024 * 1024,
        ),
    )(u, y, bw1, bb1, bw2, bb2, tw1, tb1, tw2, tb2, bias2d)

    return out


def make_params(key, branch_sizes, trunk_sizes):
    """Deterministic init. Weights stored as [in, out]; biases as [1, out]."""
    ks = jax.random.split(key, 8)

    def lin(kw, kb, fan_in, fan_out):
        scale = 1.0 / jnp.sqrt(fan_in)
        w = jax.random.uniform(kw, (fan_in, fan_out), jnp.float32, -scale, scale)
        b = jax.random.uniform(kb, (1, fan_out), jnp.float32, -scale, scale)
        return w, b

    bw1, bb1 = lin(ks[0], ks[1], branch_sizes[0], branch_sizes[1])
    bw2, bb2 = lin(ks[2], ks[3], branch_sizes[1], branch_sizes[2])
    tw1, tb1 = lin(ks[4], ks[5], trunk_sizes[0], trunk_sizes[1])
    tw2, tb2 = lin(ks[6], ks[7], trunk_sizes[1], trunk_sizes[2])
    bias = jnp.zeros((1,), jnp.float32)  # DeepONet scalar dot-product bias
    return (bw1, bb1, bw2, bb2, tw1, tb1, tw2, tb2, bias)


def deeponet_ref(u, y, params):
    """Pure-JAX reference matching the PyTorch forward semantics (2D y path)."""
    (bw1, bb1, bw2, bb2, tw1, tb1, tw2, tb2, bias) = params
    branch = jnp.tanh(u @ bw1 + bb1) @ bw2 + bb2          # [B, p]
    trunk = jnp.tanh(y @ tw1 + tb1) @ tw2 + tb2           # [N, p]
    return branch @ trunk.T + bias[0]                     # [B, N]


if __name__ == "__main__":
    # Shapes consistent with the module:
    #   branch_layer_sizes = [16, 32, 32], trunk_layer_sizes = [2, 32, 32]
    branch_sizes = [16, 32, 32]
    trunk_sizes = [2, 32, 32]

    key = jax.random.PRNGKey(0)
    k_u, k_y, k_p, k_u2, k_y2 = jax.random.split(key, 5)
    params = make_params(k_p, branch_sizes, trunk_sizes)

    # --- small shape test (single tile, ragged edges masked) ---
    B, N = 2, 8
    u = jax.random.normal(k_u, (B, branch_sizes[0]), jnp.float32)
    y = jax.random.normal(k_y, (N, trunk_sizes[0]), jnp.float32)

    out = jax.block_until_ready(deeponet_forward(u, y, params))
    ref = deeponet_ref(u, y, params)
    assert out.shape == (B, N)
    assert jnp.allclose(out, ref, atol=1e-5, rtol=1e-5)

    # --- gridded shape test (multi-tile grid, non-dividing B and N) ---
    B2, N2 = 600, 1200
    u2 = jax.random.normal(k_u2, (B2, branch_sizes[0]), jnp.float32)
    y2 = jax.random.normal(k_y2, (N2, trunk_sizes[0]), jnp.float32)

    out2 = jax.block_until_ready(deeponet_forward(u2, y2, params))
    ref2 = deeponet_ref(u2, y2, params)
    assert out2.shape == (B2, N2)
    assert jnp.allclose(out2, ref2, atol=1e-4, rtol=1e-4)

    print("KERNEL_OK")
</pallas_src>

<mosaic_0001>
module attributes {stable_mosaic.version = 11 : i64} {
  func.func @deeponet_kernel(%arg0: i32, %arg1: i32, %arg2: memref<8x16xf32, #tpu.memory_space<vmem>>, %arg3: memref<128x2xf32, #tpu.memory_space<vmem>>, %arg4: memref<16x32xf32, #tpu.memory_space<vmem>>, %arg5: memref<1x32xf32, #tpu.memory_space<vmem>>, %arg6: memref<32x32xf32, #tpu.memory_space<vmem>>, %arg7: memref<1x32xf32, #tpu.memory_space<vmem>>, %arg8: memref<2x32xf32, #tpu.memory_space<vmem>>, %arg9: memref<1x32xf32, #tpu.memory_space<vmem>>, %arg10: memref<32x32xf32, #tpu.memory_space<vmem>>, %arg11: memref<1x32xf32, #tpu.memory_space<vmem>>, %arg12: memref<1x1xf32, #tpu.memory_space<smem>>, %arg13: memref<8x128xf32, #tpu.memory_space<vmem>>) attributes {dimension_semantics = [#tpu.dimension_semantics<parallel>, #tpu.dimension_semantics<parallel>], iteration_bounds = array<i64: 1, 1>, scalar_prefetch = 0 : i64, scratch_operands = 0 : i64, tpu.core_type = #tpu.core_type<tc>, window_params = [{transform_indices = @transform_0, window_bounds = array<i64: 8, 16>}, {transform_indices = @transform_1, window_bounds = array<i64: 128, 2>}, {pipeline_mode = #tpu.pipeline_mode<synchronous>, transform_indices = @transform_2, window_bounds = array<i64: 16, 32>}, {pipeline_mode = #tpu.pipeline_mode<synchronous>, transform_indices = @transform_3, window_bounds = array<i64: 1, 32>}, {pipeline_mode = #tpu.pipeline_mode<synchronous>, transform_indices = @transform_4, window_bounds = array<i64: 32, 32>}, {pipeline_mode = #tpu.pipeline_mode<synchronous>, transform_indices = @transform_5, window_bounds = array<i64: 1, 32>}, {pipeline_mode = #tpu.pipeline_mode<synchronous>, transform_indices = @transform_6, window_bounds = array<i64: 2, 32>}, {pipeline_mode = #tpu.pipeline_mode<synchronous>, transform_indices = @transform_7, window_bounds = array<i64: 1, 32>}, {pipeline_mode = #tpu.pipeline_mode<synchronous>, transform_indices = @transform_8, window_bounds = array<i64: 32, 32>}, {pipeline_mode = #tpu.pipeline_mode<synchronous>, transform_indices = @transform_9, window_bounds = array<i64: 1, 32>}, {transform_indices = @transform_10, window_bounds = array<i64: 1, 1>}, {transform_indices = @transform_11, window_bounds = array<i64: 8, 128>}]} {
    %c0 = arith.constant 0 : index
    %c0_0 = arith.constant 0 : index
    %0 = vector.load %arg3[%c0, %c0_0] : memref<128x2xf32, #tpu.memory_space<vmem>>, vector<128x2xf32>
    %c0_1 = arith.constant 0 : index
    %c0_2 = arith.constant 0 : index
    %1 = vector.load %arg8[%c0_1, %c0_2] : memref<2x32xf32, #tpu.memory_space<vmem>>, vector<2x32xf32>
    %cst = arith.constant dense<0.000000e+00> : vector<128x32xf32>
    %2 = tpu.matmul %0, %1, %cst {dimension_numbers = #tpu.dot_dimension_numbers<[1], [0], [0], [1], [0, 0, 1, 1], [], []>} : vector<128x2xf32>, vector<2x32xf32>, vector<128x32xf32> -> vector<128x32xf32>
    %c0_3 = arith.constant 0 : index
    %c0_4 = arith.constant 0 : index
    %3 = vector.load %arg9[%c0_3, %c0_4] : memref<1x32xf32, #tpu.memory_space<vmem>>, vector<1x32xf32>
    %4 = vector.broadcast %3 : vector<1x32xf32> to vector<128x32xf32>
    %5 = arith.addf %2, %4 : vector<128x32xf32>
    %6 = math.tanh %5 : vector<128x32xf32>
    %c0_5 = arith.constant 0 : index
    %c0_6 = arith.constant 0 : index
    %7 = vector.load %arg10[%c0_5, %c0_6] : memref<32x32xf32, #tpu.memory_space<vmem>>, vector<32x32xf32>
    %cst_7 = arith.constant dense<0.000000e+00> : vector<128x32xf32>
    %8 = tpu.matmul %6, %7, %cst_7 {dimension_numbers = #tpu.dot_dimension_numbers<[1], [0], [0], [1], [0, 0, 1, 1], [], []>} : vector<128x32xf32>, vector<32x32xf32>, vector<128x32xf32> -> vector<128x32xf32>
    %c0_8 = arith.constant 0 : index
    %c0_9 = arith.constant 0 : index
    %9 = vector.load %arg11[%c0_8, %c0_9] : memref<1x32xf32, #tpu.memory_space<vmem>>, vector<1x32xf32>
    %10 = vector.broadcast %9 : vector<1x32xf32> to vector<128x32xf32>
    %11 = arith.addf %8, %10 : vector<128x32xf32>
    %c0_10 = arith.constant 0 : index
    %c0_11 = arith.constant 0 : index
    %12 = vector.load %arg2[%c0_10, %c0_11] : memref<8x16xf32, #tpu.memory_space<vmem>>, vector<8x16xf32>
    %c0_12 = arith.constant 0 : index
    %c0_13 = arith.constant 0 : index
    %13 = vector.load %arg4[%c0_12, %c0_13] : memref<16x32xf32, #tpu.memory_space<vmem>>, vector<16x32xf32>
    %cst_14 = arith.constant dense<0.000000e+00> : vector<8x32xf32>
    %14 = tpu.matmul %12, %13, %cst_14 {dimension_numbers = #tpu.dot_dimension_numbers<[1], [0], [0], [1], [0, 0, 1, 1], [], []>} : vector<8x16xf32>, vector<16x32xf32>, vector<8x32xf32> -> vector<8x32xf32>
    %c0_15 = arith.constant 0 : index
    %c0_16 = arith.constant 0 : index
    %15 = vector.load %arg5[%c0_15, %c0_16] : memref<1x32xf32, #tpu.memory_space<vmem>>, vector<1x32xf32>
    %16 = vector.broadcast %15 : vector<1x32xf32> to vector<8x32xf32>
    %17 = arith.addf %14, %16 : vector<8x32xf32>
    %18 = math.tanh %17 : vector<8x32xf32>
    %c0_17 = arith.constant 0 : index
    %c0_18 = arith.constant 0 : index
    %19 = vector.load %arg6[%c0_17, %c0_18] : memref<32x32xf32, #tpu.memory_space<vmem>>, vector<32x32xf32>
    %cst_19 = arith.constant dense<0.000000e+00> : vector<8x32xf32>
    %20 = tpu.matmul %18, %19, %cst_19 {dimension_numbers = #tpu.dot_dimension_numbers<[1], [0], [0], [1], [0, 0, 1, 1], [], []>} : vector<8x32xf32>, vector<32x32xf32>, vector<8x32xf32> -> vector<8x32xf32>
    %c0_20 = arith.constant 0 : index
    %c0_21 = arith.constant 0 : index
    %21 = vector.load %arg7[%c0_20, %c0_21] : memref<1x32xf32, #tpu.memory_space<vmem>>, vector<1x32xf32>
    %22 = vector.broadcast %21 : vector<1x32xf32> to vector<8x32xf32>
    %23 = arith.addf %20, %22 : vector<8x32xf32>
    %cst_22 = arith.constant dense<0.000000e+00> : vector<8x128xf32>
    %24 = tpu.matmul %23, %11, %cst_22 {dimension_numbers = #tpu.dot_dimension_numbers<[1], [1], [0], [0], [0, 0, 1, 0], [], []>} : vector<8x32xf32>, vector<128x32xf32>, vector<8x128xf32> -> vector<8x128xf32>
    %c0_23 = arith.constant 0 : index
    %c0_24 = arith.constant 0 : index
    %25 = memref.load %arg12[%c0_23, %c0_24] : memref<1x1xf32, #tpu.memory_space<smem>>
    %26 = vector.broadcast %25 : f32 to vector<8x128xf32>
    %27 = arith.addf %24, %26 : vector<8x128xf32>
    %c0_25 = arith.constant 0 : index
    %c0_26 = arith.constant 0 : index
    %28 = vector.load %arg13[%c0_25, %c0_26] : memref<8x128xf32, #tpu.memory_space<vmem>>, vector<8x128xf32>
    tpu.vector_store %arg13[%c0_25, %c0_26], %27 {strides = array<i32>} : memref<8x128xf32, #tpu.memory_space<vmem>>, vector<8x128xf32>,
    return
  }
  func.func @transform_0(%arg0: i32, %arg1: i32) -> (i32, i32) {
    %c0_i32 = arith.constant 0 : i32
    %c0_i32_0 = arith.constant 0 : i32
    return %arg0, %c0_i32 : i32, i32
  }
  func.func @transform_1(%arg0: i32, %arg1: i32) -> (i32, i32) {
    %c0_i32 = arith.constant 0 : i32
    %c0_i32_0 = arith.constant 0 : i32
    return %arg1, %c0_i32 : i32, i32
  }
  func.func @transform_2(%arg0: i32, %arg1: i32) -> (i32, i32) {
    %c0_i32 = arith.constant 0 : i32
    %c0_i32_0 = arith.constant 0 : i32
    %c0_i32_1 = arith.constant 0 : i32
    return %c0_i32, %c0_i32_0 : i32, i32
  }
  func.func @transform_3(%arg0: i32, %arg1: i32) -> (i32, i32) {
    %c0_i32 = arith.constant 0 : i32
    %c0_i32_0 = arith.constant 0 : i32
    %c0_i32_1 = arith.constant 0 : i32
    return %c0_i32, %c0_i32_0 : i32, i32
  }
  func.func @transform_4(%arg0: i32, %arg1: i32) -> (i32, i32) {
    %c0_i32 = arith.constant 0 : i32
    %c0_i32_0 = arith.constant 0 : i32
    %c0_i32_1 = arith.constant 0 : i32
    return %c0_i32, %c0_i32_0 : i32, i32
  }
  func.func @transform_5(%arg0: i32, %arg1: i32) -> (i32, i32) {
    %c0_i32 = arith.constant 0 : i32
    %c0_i32_0 = arith.constant 0 : i32
    %c0_i32_1 = arith.constant 0 : i32
    return %c0_i32, %c0_i32_0 : i32, i32
  }
  func.func @transform_6(%arg0: i32, %arg1: i32) -> (i32, i32) {
    %c0_i32 = arith.constant 0 : i32
    %c0_i32_0 = arith.constant 0 : i32
    %c0_i32_1 = arith.constant 0 : i32
    return %c0_i32, %c0_i32_0 : i32, i32
  }
  func.func @transform_7(%arg0: i32, %arg1: i32) -> (i32, i32) {
    %c0_i32 = arith.constant 0 : i32
    %c0_i32_0 = arith.constant 0 : i32
    %c0_i32_1 = arith.constant 0 : i32
    return %c0_i32, %c0_i32_0 : i32, i32
  }
  func.func @transform_8(%arg0: i32, %arg1: i32) -> (i32, i32) {
    %c0_i32 = arith.constant 0 : i32
    %c0_i32_0 = arith.constant 0 : i32
    %c0_i32_1 = arith.constant 0 : i32
    return %c0_i32, %c0_i32_0 : i32, i32
  }
  func.func @transform_9(%arg0: i32, %arg1: i32) -> (i32, i32) {
    %c0_i32 = arith.constant 0 : i32
    %c0_i32_0 = arith.constant 0 : i32
    %c0_i32_1 = arith.constant 0 : i32
    return %c0_i32, %c0_i32_0 : i32, i32
  }
  func.func @transform_10(%arg0: i32, %arg1: i32) -> (i32, i32) {
    %c0_i32 = arith.constant 0 : i32
    %c0_i32_0 = arith.constant 0 : i32
    %c0_i32_1 = arith.constant 0 : i32
    return %c0_i32, %c0_i32_0 : i32, i32
  }
  func.func @transform_11(%arg0: i32, %arg1: i32) -> (i32, i32) {
    %c0_i32 = arith.constant 0 : i32
    return %arg0, %arg1 : i32, i32
  }
}

</mosaic_0001>

<llo_original>
// kernel: tpu_custom_call.1
$region0: #{tpu_custom_call.1}
  #allocation0 [shape = 'u32[]', space=smem, size = 0x4, offset = 0x4, fixed_abs, tag = 'smem constant byte address 0x4 - core index']
  #allocation1 [shape = 'u32[144,128]{1,0:T(1,128)}', space=vmem, size = 0x12000, scoped, tag = 'internal scratch']
  #allocation2 [shape = 'f32[1,1]{1,0:T(1,128)S(6)}', space=smem, size = 0x200, scoped, tag = 'scoped memory for tpu_custom_call.1']
  %s0 = inlined_call_operand.vmem [shape: f32[2,16], index: 0, kind: input, shape index: {}]
  %s1 = inlined_call_operand.vmem [shape: f32[8,2], index: 1, kind: input, shape index: {}]
  %s2 = inlined_call_operand.hbm [shape: f32[16,32], index: 2, kind: input, shape index: {}]
  %s3 = inlined_call_operand.vmem [shape: f32[1,32], index: 3, kind: input, shape index: {}]
  %s4 = inlined_call_operand.hbm [shape: f32[32,32], index: 4, kind: input, shape index: {}]
  %s5 = inlined_call_operand.vmem [shape: f32[1,32], index: 5, kind: input, shape index: {}]
  %s6 = inlined_call_operand.vmem [shape: f32[2,32], index: 6, kind: input, shape index: {}]
  %s7 = inlined_call_operand.vmem [shape: f32[1,32], index: 7, kind: input, shape index: {}]
  %s8 = inlined_call_operand.hbm [shape: f32[32,32], index: 8, kind: input, shape index: {}]
  %s9 = inlined_call_operand.vmem [shape: f32[1,32], index: 9, kind: input, shape index: {}]
  %s10 = inlined_call_operand.<no memory space> [shape: f32[1,1], index: 10, kind: input, shape index: {}]
  %s11 = inlined_call_operand.hbm [shape: f32[2,8], index: 11, kind: output, shape index: {}]
  %s12 = sld [smem:[#allocation0]]
  $region66: #{tpu_custom_call.1} parent=0
    _
  %s14 = ssub.s32 1, %s12
  %s15 = scalar_select 0, %s14, %s12
  %16 = sst [smem:[#allocation2]] %s10
  $region1: #{tpu_custom_call.1} parent=0
    #allocation3 [shape = 'u8[8192]{0}', space=vmem, size = 0x2000, scoped, tag = 'input window, operand 2, single buffered']
    #allocation4 [shape = 's32[1]{0}', space=sflag, size = 0x4, scoped, tag = 'scoped memory for tpu_custom_call.1']
    #allocation5 [shape = 's32[1]{0}', space=sflag, size = 0x4, scoped, tag = 'scoped memory for tpu_custom_call.1']
    #allocation6 [shape = 'u8[16384]{0}', space=vmem, size = 0x4000, scoped, tag = 'input window, operand 4, single buffered']
    #allocation7 [shape = 's32[1]{0}', space=sflag, size = 0x4, scoped, tag = 'scoped memory for tpu_custom_call.1']
    #allocation8 [shape = 'u8[16384]{0}', space=vmem, size = 0x4000, scoped, tag = 'input window, operand 8, single buffered']
    #allocation9 [shape = 'u8[4096]{0}', space=vmem, size = 0x1000, scoped, tag = 'output window, operand 0, single buffered']
    %17 = vsyncpa [#allocation4], 0
    %18 = vsyncpa [#allocation7], 0
    %19 = vsyncpa [#allocation5], 0
    // Predicated region
    $region2: #{tpu_custom_call.1} parent=1 // pred_check
      _
    $region3: #{tpu_custom_call.1} parent=1 // pred_check_branch
      %21 = sbr.rel (0) target = $region5
    $region4: #{tpu_custom_call.1} parent=1 // pred_region
      _
    $region5: #{tpu_custom_call.1} parent=1 // pred_fallthru
      _
    // Predicated region
    $region6: #{tpu_custom_call.1} parent=1 // pred_check
      _
    $region7: #{tpu_custom_call.1} parent=1 // pred_check_branch
      %23 = sbr.rel (0) target = $region9
    $region8: #{tpu_custom_call.1} parent=1 // pred_region
      _
    $region9: #{tpu_custom_call.1} parent=1 // pred_fallthru
      _
    // Predicated region
    $region10: #{tpu_custom_call.1} parent=1 // pred_check
      _
    $region11: #{tpu_custom_call.1} parent=1 // pred_check_branch
      %25 = sbr.rel (0) target = $region13
    $region12: #{tpu_custom_call.1} parent=1 // pred_region
      %s27 = ssub.s32 256, 256
      %28 = vsyncadd [#allocation4], %s27
      %s29 = sshll.u32 [#allocation3], 4
      %s30 = int_to_ptr.vmem [resolvable:$true] %s29
      %35 = dma.hbm_to_vmem [thread:$0]  %s2, 256, %s30, [#allocation4], 128, 128, 8
    $region13: #{tpu_custom_call.1} parent=1 // pred_fallthru
      _
    // Predicated region
    $region14: #{tpu_custom_call.1} parent=1 // pred_check
      _
    $region15: #{tpu_custom_call.1} parent=1 // pred_check_branch
      %37 = sbr.rel (0) target = $region17
    $region16: #{tpu_custom_call.1} parent=1 // pred_region
      _
    $region17: #{tpu_custom_call.1} parent=1 // pred_fallthru
      _
    // Predicated region
    $region18: #{tpu_custom_call.1} parent=1 // pred_check
      _
    $region19: #{tpu_custom_call.1} parent=1 // pred_check_branch
      %39 = sbr.rel (0) target = $region21
    $region20: #{tpu_custom_call.1} parent=1 // pred_region
      %s41 = ssub.s32 512, 512
      %42 = vsyncadd [#allocation7], %s41
      %s43 = sshll.u32 [#allocation6], 4
      %s44 = int_to_ptr.vmem [resolvable:$true] %s43
      %49 = dma.hbm_to_vmem [thread:$0]  %s4, 512, %s44, [#allocation7], 128, 128, 8
    $region21: #{tpu_custom_call.1} parent=1 // pred_fallthru
      _
    // Predicated region
    $region22: #{tpu_custom_call.1} parent=1 // pred_check
      _
    $region23: #{tpu_custom_call.1} parent=1 // pred_check_branch
      %51 = sbr.rel (0) target = $region25
    $region24: #{tpu_custom_call.1} parent=1 // pred_region
      _
    $region25: #{tpu_custom_call.1} parent=1 // pred_fallthru
      _
    // Predicated region
    $region26: #{tpu_custom_call.1} parent=1 // pred_check
      _
    $region27: #{tpu_custom_call.1} parent=1 // pred_check_branch
      %53 = sbr.rel (0) target = $region29
    $region28: #{tpu_custom_call.1} parent=1 // pred_region
      _
    $region29: #{tpu_custom_call.1} parent=1 // pred_fallthru
      _
    // Predicated region
    $region30: #{tpu_custom_call.1} parent=1 // pred_check
      _
    $region31: #{tpu_custom_call.1} parent=1 // pred_check_branch
      %55 = sbr.rel (0) target = $region33
    $region32: #{tpu_custom_call.1} parent=1 // pred_region
      _
    $region33: #{tpu_custom_call.1} parent=1 // pred_fallthru
      _
    // Predicated region
    $region34: #{tpu_custom_call.1} parent=1 // pred_check
      _
    $region35: #{tpu_custom_call.1} parent=1 // pred_check_branch
      %57 = sbr.rel (0) target = $region37
    $region36: #{tpu_custom_call.1} parent=1 // pred_region
      %s59 = ssub.s32 512, 512
      %60 = vsyncadd [#allocation7], %s59
      %s61 = sshll.u32 [#allocation8], 4
      %s62 = int_to_ptr.vmem [resolvable:$true] %s61
      %67 = dma.hbm_to_vmem [thread:$0]  %s8, 512, %s62, [#allocation7], 128, 128, 8
    $region37: #{tpu_custom_call.1} parent=1 // pred_fallthru
      _
    // Predicated region
    $region38: #{tpu_custom_call.1} parent=1 // pred_check
      _
    $region39: #{tpu_custom_call.1} parent=1 // pred_check_branch
      %69 = sbr.rel (0) target = $region41
    $region40: #{tpu_custom_call.1} parent=1 // pred_region
      _
    $region41: #{tpu_custom_call.1} parent=1 // pred_fallthru
      _
    // Predicated region
    $region42: #{tpu_custom_call.1} parent=1 // pred_check
      _
    $region43: #{tpu_custom_call.1} parent=1 // pred_check_branch
      %71 = sbr.rel (0) target = $region45
    $region44: #{tpu_custom_call.1} parent=1 // pred_region
      _
    $region45: #{tpu_custom_call.1} parent=1 // pred_fallthru
      _
    // Predicated region
    $region46: #{tpu_custom_call.1} parent=1 // pred_check
      _
    $region47: #{tpu_custom_call.1} parent=1 // pred_check_branch
      %73 = sbr.rel (0) target = $region49
    $region48: #{tpu_custom_call.1} parent=1 // pred_region
      %74 = dma.done [#allocation4], 256
    $region49: #{tpu_custom_call.1} parent=1 // pred_fallthru
      _
    // Predicated region
    $region50: #{tpu_custom_call.1} parent=1 // pred_check
      _
    $region51: #{tpu_custom_call.1} parent=1 // pred_check_branch
      %76 = sbr.rel (0) target = $region53
    $region52: #{tpu_custom_call.1} parent=1 // pred_region
      %77 = dma.done [#allocation7], 512
    $region53: #{tpu_custom_call.1} parent=1 // pred_fallthru
      _
    // Predicated region
    $region54: #{tpu_custom_call.1} parent=1 // pred_check
      _
    $region55: #{tpu_custom_call.1} parent=1 // pred_check_branch
      %79 = sbr.rel (0) target = $region57
    $region56: #{tpu_custom_call.1} parent=1 // pred_region
      %80 = dma.done [#allocation7], 512
    $region57: #{tpu_custom_call.1} parent=1 // pred_fallthru
      _
    %v81 = vld [vmem:[%s1] sm:$0xff]
    %v82 = vld [vmem:[%s1 + $0x8] sm:$0xff]
    %v83 = vld [vmem:[%s1 + $0x10] sm:$0xff]
    %v84 = vld [vmem:[%s1 + $0x18] sm:$0xff]
    %v85 = vld [vmem:[%s1 + $0x20] sm:$0xff]
    %v86 = vld [vmem:[%s1 + $0x28] sm:$0xff]
    %v87 = vld [vmem:[%s1 + $0x30] sm:$0xff]
    %v88 = vld [vmem:[%s1 + $0x38] sm:$0xff]
    %v89 = vld [vmem:[%s1 + $0x40] sm:$0xff]
    %v90 = vld [vmem:[%s1 + $0x48] sm:$0xff]
    %v91 = vld [vmem:[%s1 + $0x50] sm:$0xff]
    %v92 = vld [vmem:[%s1 + $0x58] sm:$0xff]
    %v93 = vld [vmem:[%s1 + $0x60] sm:$0xff]
    %v94 = vld [vmem:[%s1 + $0x68] sm:$0xff]
    %v95 = vld [vmem:[%s1 + $0x70] sm:$0xff]
    %v96 = vld [vmem:[%s1 + $0x78] sm:$0xff]
    %v97 = vld [vmem:[%s6] sm:$0x3]
    %v98 = vld [vmem:[%s7] sm:$0x1]
    %v100 = vlaneseq
    %v101 = vshrl.u32 %v100, 7
    %v102 = vsub.s32 0, %v101
    %v103 = vrot.slane %v98, %v102
    %vm105 = vcmask 15360
    %v107 = vsel %vm105, %v81, 0
    %v110 = vsel %vm105, %v82, 0
    %v113 = vsel %vm105, %v83, 0
    %v116 = vsel %vm105, %v84, 0
    %v119 = vsel %vm105, %v85, 0
    %v122 = vsel %vm105, %v86, 0
    %v125 = vsel %vm105, %v87, 0
    %v128 = vsel %vm105, %v88, 0
    %v131 = vsel %vm105, %v89, 0
    %v134 = vsel %vm105, %v90, 0
    %v137 = vsel %vm105, %v91, 0
    %v140 = vsel %vm105, %v92, 0
    %v143 = vsel %vm105, %v93, 0
    %v146 = vsel %vm105, %v94, 0
    %v149 = vsel %vm105, %v95, 0
    %v152 = vsel %vm105, %v96, 0
    %vm154 = vcmask 1041408
    %v156 = vsel %vm154, %v97, 0
    %158 = vmatprep.subr.mxu0 0.0
    %159 = vmatpush1.msra.mxu0 0.0
    %160 = vmatprep.subr.mxu0 0.0
    %161 = vmatpush1.msra.mxu0 0.0
    %162 = vmatprep.subr.mxu0 0.0
    %163 = vmatpush1.msra.mxu0 0.0
    %164 = vmatprep.subr.mxu0 0.0
    %165 = vmatpush1.msra.mxu0 0.0
    %166 = vmatprep.subr.mxu0 0.0
    %167 = vmatpush1.msra.mxu0 0.0
    %168 = vmatprep.subr.mxu0 0.0
    %169 = vmatpush1.msra.mxu0 0.0
    %170 = vmatprep.subr.mxu0 0.0
    %171 = vmatpush1.msra.mxu0 0.0
    %172 = vmatprep.subr.mxu0 0.0
    %173 = vmatpush1.msra.mxu0 0.0
    %174 = vmatprep.subr.mxu0 0.0
    %175 = vmatpush1.msra.mxu0 0.0
    %176 = vmatprep.subr.mxu0 0.0
    %177 = vmatpush1.msra.mxu0 0.0
    %178 = vmatprep.subr.mxu0 0.0
    %179 = vmatpush1.msra.mxu0 0.0
    %180 = vmatprep.subr.mxu0 0.0
    %181 = vmatpush1.msra.mxu0 0.0
    %182 = vmatprep.subr.mxu0 0.0
    %183 = vmatpush1.msra.mxu0 0.0
    %184 = vmatprep.subr.mxu0 0.0
    %185 = vmatpush1.msra.mxu0 0.0
    %186 = vmatprep.subr.mxu0 0.0
    %187 = vmatpush1.msra.mxu0 0.0
    %188 = vmatprep.subr.mxu0 0.0
    %189 = vmatpush1.msra.mxu0 %v156
    %190 = vmatprep.subr.mxu0 0.0
    %191 = vmatpush2.msra.mxu0 0.0
    %192 = vmatprep.subr.mxu0 0.0
    %193 = vmatpush2.msra.mxu0 0.0
    %194 = vmatprep.subr.mxu0 0.0
    %195 = vmatpush2.msra.mxu0 0.0
    %196 = vmatprep.subr.mxu0 0.0
    %197 = vmatpush2.msra.mxu0 0.0
    %198 = vmatprep.subr.mxu0 0.0
    %199 = vmatpush2.msra.mxu0 0.0
    %200 = vmatprep.subr.mxu0 0.0
    %201 = vmatpush2.msra.mxu0 0.0
    %202 = vmatprep.subr.mxu0 0.0
    %203 = vmatpush2.msra.mxu0 0.0
    %204 = vmatprep.subr.mxu0 0.0
    %205 = vmatpush2.msra.mxu0 0.0
    %206 = vmatprep.subr.mxu0 0.0
    %207 = vmatpush2.msra.mxu0 0.0
    %208 = vmatprep.subr.mxu0 0.0
    %209 = vmatpush2.msra.mxu0 0.0
    %210 = vmatprep.subr.mxu0 0.0
    %211 = vmatpush2.msra.mxu0 0.0
    %212 = vmatprep.subr.mxu0 0.0
    %213 = vmatpush2.msra.mxu0 0.0
    %214 = vmatprep.subr.mxu0 0.0
    %215 = vmatpush2.msra.mxu0 0.0
    %216 = vmatprep.subr.mxu0 0.0
    %217 = vmatpush2.msra.mxu0 0.0
    %218 = vmatprep.subr.mxu0 0.0
    %219 = vmatpush2.msra.mxu0 0.0
    %220 = vmatprep.subr.mxu0 0.0
    %221 = vmatpush2.msra.mxu0 0.0
    %222 = vmatprep.mubr.f32.mxu0 0.0
    %223 = vmatmul.mubr.f32.gmra.mxu0 %v107
    %v224 = vpop.f32.mrf.mxu0
    %v225 = vadd.f32 %v103, %v224
    %v226 = vpop.f32.mrf.mxu0
    %227 = vmatprep.mubr.f32.mxu0 0.0
    %228 = vmatmul.mubr.f32.gmra.mxu0 %v110
    %v229 = vpop.f32.mrf.mxu0
    %v230 = vadd.f32 %v103, %v229
    %v231 = vpop.f32.mrf.mxu0
    %232 = vmatprep.mubr.f32.mxu0 0.0
    %233 = vmatmul.mubr.f32.gmra.mxu0 %v113
    %v234 = vpop.f32.mrf.mxu0
    %v235 = vadd.f32 %v103, %v234
    %v236 = vpop.f32.mrf.mxu0
    %237 = vmatprep.mubr.f32.mxu0 0.0
    %238 = vmatmul.mubr.f32.gmra.mxu0 %v116
    %v239 = vpop.f32.mrf.mxu0
    %v240 = vadd.f32 %v103, %v239
    %v241 = vpop.f32.mrf.mxu0
    %242 = vmatprep.mubr.f32.mxu0 0.0
    %243 = vmatmul.mubr.f32.gmra.mxu0 %v119
    %v244 = vpop.f32.mrf.mxu0
    %v245 = vadd.f32 %v103, %v244
    %v246 = vpop.f32.mrf.mxu0
    %247 = vmatprep.mubr.f32.mxu0 0.0
    %248 = vmatmul.mubr.f32.gmra.mxu0 %v122
    %v249 = vpop.f32.mrf.mxu0
    %v250 = vadd.f32 %v103, %v249
    %v251 = vpop.f32.mrf.mxu0
    %252 = vmatprep.mubr.f32.mxu0 0.0
    %253 = vmatmul.mubr.f32.gmra.mxu0 %v125
    %v254 = vpop.f32.mrf.mxu0
    %v255 = vadd.f32 %v103, %v254
    %v256 = vpop.f32.mrf.mxu0
    %257 = vmatprep.mubr.f32.mxu0 0.0
    %258 = vmatmul.mubr.f32.gmra.mxu0 %v128
    %v259 = vpop.f32.mrf.mxu0
    %v260 = vadd.f32 %v103, %v259
    %v261 = vpop.f32.mrf.mxu0
    %262 = vmatprep.mubr.f32.mxu0 0.0
    %263 = vmatmul.mubr.f32.gmra.mxu0 %v131
    %v264 = vpop.f32.mrf.mxu0
    %v265 = vadd.f32 %v103, %v264
    %v266 = vpop.f32.mrf.mxu0
    %267 = vmatprep.mubr.f32.mxu0 0.0
    %268 = vmatmul.mubr.f32.gmra.mxu0 %v134
    %v269 = vpop.f32.mrf.mxu0
    %v270 = vadd.f32 %v103, %v269
    %v271 = vpop.f32.mrf.mxu0
    %272 = vmatprep.mubr.f32.mxu0 0.0
    %273 = vmatmul.mubr.f32.gmra.mxu0 %v137
    %v274 = vpop.f32.mrf.mxu0
    %v275 = vadd.f32 %v103, %v274
    %v276 = vpop.f32.mrf.mxu0
    %277 = vmatprep.mubr.f32.mxu0 0.0
    %278 = vmatmul.mubr.f32.gmra.mxu0 %v140
    %v279 = vpop.f32.mrf.mxu0
    %v280 = vadd.f32 %v103, %v279
    %v281 = vpop.f32.mrf.mxu0
    %282 = vmatprep.mubr.f32.mxu0 0.0
    %283 = vmatmul.mubr.f32.gmra.mxu0 %v143
    %v284 = vpop.f32.mrf.mxu0
    %v285 = vadd.f32 %v103, %v284
    %v286 = vpop.f32.mrf.mxu0
    %287 = vmatprep.mubr.f32.mxu0 0.0
    %288 = vmatmul.mubr.f32.gmra.mxu0 %v146
    %v289 = vpop.f32.mrf.mxu0
    %v290 = vadd.f32 %v103, %v289
    %v291 = vpop.f32.mrf.mxu0
    %292 = vmatprep.mubr.f32.mxu0 0.0
    %293 = vmatmul.mubr.f32.gmra.mxu0 %v149
    %v294 = vpop.f32.mrf.mxu0
    %v295 = vadd.f32 %v103, %v294
    %v296 = vpop.f32.mrf.mxu0
    %297 = vmatprep.mubr.f32.mxu0 0.0
    %298 = vmatmul.mubr.f32.gmra.mxu0 %v152
    %v299 = vpop.f32.mrf.mxu0
    %v300 = vadd.f32 %v103, %v299
    %v301 = vpop.f32.mrf.mxu0
    %302 = vdwg.mxu0
    %v303 = vtanh.pop %v225
    %v304 = vtanh.pop %v230
    %v305 = vtanh.pop %v235
    %v306 = vtanh.pop %v240
    %v307 = vtanh.pop %v245
    %v308 = vtanh.pop %v250
    %v309 = vtanh.pop %v255
    %v310 = vtanh.pop %v260
    %v311 = vtanh.pop %v265
    %v312 = vtanh.pop %v270
    %v313 = vtanh.pop %v275
    %v314 = vtanh.pop %v280
    %v315 = vtanh.pop %v285
    %v316 = vtanh.pop %v290
    %v317 = vtanh.pop %v295
    %v318 = vtanh.pop %v300
    %v319 = vld [vmem:[#allocation8] sm:$0xff]
    %v320 = vld [vmem:[#allocation8 + $0x8] sm:$0xff]
    %v321 = vld [vmem:[#allocation8 + $0x10] sm:$0xff]
    %v322 = vld [vmem:[#allocation8 + $0x18] sm:$0xff]
    %v323 = vld [vmem:[%s9] sm:$0x1]
    %v325 = vlaneseq
    %v326 = vshrl.u32 %v325, 7
    %v327 = vsub.s32 0, %v326
    %v328 = vrot.slane %v323, %v327
    %vm330 = vcmask 261120
    %v332 = vsel %vm330, %v303, 0
    %v335 = vsel %vm330, %v304, 0
    %v338 = vsel %vm330, %v305, 0
    %v341 = vsel %vm330, %v306, 0
    %v344 = vsel %vm330, %v307, 0
    %v347 = vsel %vm330, %v308, 0
    %v350 = vsel %vm330, %v309, 0
    %v353 = vsel %vm330, %v310, 0
    %v356 = vsel %vm330, %v311, 0
    %v359 = vsel %vm330, %v312, 0
    %v362 = vsel %vm330, %v313, 0
    %v365 = vsel %vm330, %v314, 0
    %v368 = vsel %vm330, %v315, 0
    %v371 = vsel %vm330, %v316, 0
    %v374 = vsel %vm330, %v317, 0
    %v377 = vsel %vm330, %v318, 0
    %379 = vmatprep.subr.mxu0 0.0
    %380 = vmatpush1.msra.mxu0 0.0
    %381 = vmatprep.subr.mxu0 0.0
    %382 = vmatpush1.msra.mxu0 0.0
    %383 = vmatprep.subr.mxu0 0.0
    %384 = vmatpush1.msra.mxu0 0.0
    %385 = vmatprep.subr.mxu0 0.0
    %386 = vmatpush1.msra.mxu0 0.0
    %387 = vmatprep.subr.mxu0 0.0
    %388 = vmatpush1.msra.mxu0 0.0
    %389 = vmatprep.subr.mxu0 0.0
    %390 = vmatpush1.msra.mxu0 0.0
    %391 = vmatprep.subr.mxu0 0.0
    %392 = vmatpush1.msra.mxu0 0.0
    %393 = vmatprep.subr.mxu0 0.0
    %394 = vmatpush1.msra.mxu0 0.0
    %395 = vmatprep.subr.mxu0 0.0
    %396 = vmatpush1.msra.mxu0 0.0
    %397 = vmatprep.subr.mxu0 0.0
    %398 = vmatpush1.msra.mxu0 0.0
    %399 = vmatprep.subr.mxu0 0.0
    %400 = vmatpush1.msra.mxu0 0.0
    %401 = vmatprep.subr.mxu0 0.0
    %402 = vmatpush1.msra.mxu0 0.0
    %403 = vmatprep.subr.mxu0 0.0
    %404 = vmatpush1.msra.mxu0 %v322
    %405 = vmatprep.subr.mxu0 0.0
    %406 = vmatpush1.msra.mxu0 %v321
    %407 = vmatprep.subr.mxu0 0.0
    %408 = vmatpush1.msra.mxu0 %v320
    %409 = vmatprep.subr.mxu0 0.0
    %410 = vmatpush1.msra.mxu0 %v319
    %411 = vmatprep.subr.mxu0 0.0
    %412 = vmatpush2.msra.mxu0 0.0
    %413 = vmatprep.subr.mxu0 0.0
    %414 = vmatpush2.msra.mxu0 0.0
    %415 = vmatprep.subr.mxu0 0.0
    %416 = vmatpush2.msra.mxu0 0.0
    %417 = vmatprep.subr.mxu0 0.0
    %418 = vmatpush2.msra.mxu0 0.0
    %419 = vmatprep.subr.mxu0 0.0
    %420 = vmatpush2.msra.mxu0 0.0
    %421 = vmatprep.subr.mxu0 0.0
    %422 = vmatpush2.msra.mxu0 0.0
    %423 = vmatprep.subr.mxu0 0.0
    %424 = vmatpush2.msra.mxu0 0.0
    %425 = vmatprep.subr.mxu0 0.0
    %426 = vmatpush2.msra.mxu0 0.0
    %427 = vmatprep.subr.mxu0 0.0
    %428 = vmatpush2.msra.mxu0 0.0
    %429 = vmatprep.subr.mxu0 0.0
    %430 = vmatpush2.msra.mxu0 0.0
    %431 = vmatprep.subr.mxu0 0.0
    %432 = vmatpush2.msra.mxu0 0.0
    %433 = vmatprep.subr.mxu0 0.0
    %434 = vmatpush2.msra.mxu0 0.0
    %435 = vmatprep.subr.mxu0 0.0
    %436 = vmatpush2.msra.mxu0 0.0
    %437 = vmatprep.subr.mxu0 0.0
    %438 = vmatpush2.msra.mxu0 0.0
    %439 = vmatprep.subr.mxu0 0.0
    %440 = vmatpush2.msra.mxu0 0.0
    %441 = vmatprep.subr.mxu0 0.0
    %442 = vmatpush2.msra.mxu0 0.0
    %443 = vmatprep.mubr.f32.mxu0 0.0
    %444 = vmatmul.mubr.f32.gmra.mxu0 %v332
    %v445 = vpop.f32.mrf.mxu0
    %v446 = vadd.f32 %v328, %v445
    %v447 = vpop.f32.mrf.mxu0
    %448 = vmatprep.mubr.f32.mxu0 0.0
    %449 = vmatmul.mubr.f32.gmra.mxu0 %v335
    %v450 = vpop.f32.mrf.mxu0
    %v451 = vadd.f32 %v328, %v450
    %v452 = vpop.f32.mrf.mxu0
    %453 = vmatprep.mubr.f32.mxu0 0.0
    %454 = vmatmul.mubr.f32.gmra.mxu0 %v338
    %v455 = vpop.f32.mrf.mxu0
    %v456 = vadd.f32 %v328, %v455
    %v457 = vpop.f32.mrf.mxu0
    %458 = vmatprep.mubr.f32.mxu0 0.0
    %459 = vmatmul.mubr.f32.gmra.mxu0 %v341
    %v460 = vpop.f32.mrf.mxu0
    %v461 = vadd.f32 %v328, %v460
    %v462 = vpop.f32.mrf.mxu0
    %463 = vmatprep.mubr.f32.mxu0 0.0
    %464 = vmatmul.mubr.f32.gmra.mxu0 %v344
    %v465 = vpop.f32.mrf.mxu0
    %v466 = vadd.f32 %v328, %v465
    %v467 = vpop.f32.mrf.mxu0
    %468 = vmatprep.mubr.f32.mxu0 0.0
    %469 = vmatmul.mubr.f32.gmra.mxu0 %v347
    %v470 = vpop.f32.mrf.mxu0
    %v471 = vadd.f32 %v328, %v470
    %v472 = vpop.f32.mrf.mxu0
    %473 = vmatprep.mubr.f32.mxu0 0.0
    %474 = vmatmul.mubr.f32.gmra.mxu0 %v350
    %v475 = vpop.f32.mrf.mxu0
    %v476 = vadd.f32 %v328, %v475
    %v477 = vpop.f32.mrf.mxu0
    %478 = vmatprep.mubr.f32.mxu0 0.0
    %479 = vmatmul.mubr.f32.gmra.mxu0 %v353
    %v480 = vpop.f32.mrf.mxu0
    %v481 = vadd.f32 %v328, %v480
    %v482 = vpop.f32.mrf.mxu0
    %483 = vmatprep.mubr.f32.mxu0 0.0
    %484 = vmatmul.mubr.f32.gmra.mxu0 %v356
    %v485 = vpop.f32.mrf.mxu0
    %v486 = vadd.f32 %v328, %v485
    %v487 = vpop.f32.mrf.mxu0
    %488 = vmatprep.mubr.f32.mxu0 0.0
    %489 = vmatmul.mubr.f32.gmra.mxu0 %v359
    %v490 = vpop.f32.mrf.mxu0
    %v491 = vadd.f32 %v328, %v490
    %v492 = vpop.f32.mrf.mxu0
    %493 = vmatprep.mubr.f32.mxu0 0.0
    %494 = vmatmul.mubr.f32.gmra.mxu0 %v362
    %v495 = vpop.f32.mrf.mxu0
    %v496 = vadd.f32 %v328, %v495
    %v497 = vpop.f32.mrf.mxu0
    %498 = vmatprep.mubr.f32.mxu0 0.0
    %499 = vmatmul.mubr.f32.gmra.mxu0 %v365
    %v500 = vpop.f32.mrf.mxu0
    %v501 = vadd.f32 %v328, %v500
    %v502 = vpop.f32.mrf.mxu0
    %503 = vmatprep.mubr.f32.mxu0 0.0
    %504 = vmatmul.mubr.f32.gmra.mxu0 %v368
    %v505 = vpop.f32.mrf.mxu0
    %v506 = vadd.f32 %v328, %v505
    %v507 = vpop.f32.mrf.mxu0
    %508 = vmatprep.mubr.f32.mxu0 0.0
    %509 = vmatmul.mubr.f32.gmra.mxu0 %v371
    %v510 = vpop.f32.mrf.mxu0
    %v511 = vadd.f32 %v328, %v510
    %v512 = vpop.f32.mrf.mxu0
    %513 = vmatprep.mubr.f32.mxu0 0.0
    %514 = vmatmul.mubr.f32.gmra.mxu0 %v374
    %v515 = vpop.f32.mrf.mxu0
    %v516 = vadd.f32 %v328, %v515
    %v517 = vpop.f32.mrf.mxu0
    %518 = vmatprep.mubr.f32.mxu0 0.0
    %519 = vmatmul.mubr.f32.gmra.mxu0 %v377
    %v520 = vpop.f32.mrf.mxu0
    %v521 = vadd.f32 %v328, %v520
    %v522 = vpop.f32.mrf.mxu0
    %523 = vdwg.mxu0
    %v524 = vld [vmem:[%s0] sm:$0xff]
    %v525 = vld [vmem:[#allocation3] sm:$0xff]
    %v526 = vld [vmem:[#allocation3 + $0x8] sm:$0xff]
    %v527 = vld [vmem:[%s3] sm:$0x1]
    %v529 = vlaneseq
    %v530 = vshrl.u32 %v529, 7
    %v531 = vsub.s32 0, %v530
    %v532 = vrot.slane %v527, %v531
    %vm534 = vcmask 130048
    %v536 = vsel %vm534, %v524, 0
    %538 = vmatprep.subr.mxu0 0.0
    %539 = vmatpush1.msra.mxu0 0.0
    %540 = vmatprep.subr.mxu0 0.0
    %541 = vmatpush1.msra.mxu0 0.0
    %542 = vmatprep.subr.mxu0 0.0
    %543 = vmatpush1.msra.mxu0 0.0
    %544 = vmatprep.subr.mxu0 0.0
    %545 = vmatpush1.msra.mxu0 0.0
    %546 = vmatprep.subr.mxu0 0.0
    %547 = vmatpush1.msra.mxu0 0.0
    %548 = vmatprep.subr.mxu0 0.0
    %549 = vmatpush1.msra.mxu0 0.0
    %550 = vmatprep.subr.mxu0 0.0
    %551 = vmatpush1.msra.mxu0 0.0
    %552 = vmatprep.subr.mxu0 0.0
    %553 = vmatpush1.msra.mxu0 0.0
    %554 = vmatprep.subr.mxu0 0.0
    %555 = vmatpush1.msra.mxu0 0.0
    %556 = vmatprep.subr.mxu0 0.0
    %557 = vmatpush1.msra.mxu0 0.0
    %558 = vmatprep.subr.mxu0 0.0
    %559 = vmatpush1.msra.mxu0 0.0
    %560 = vmatprep.subr.mxu0 0.0
    %561 = vmatpush1.msra.mxu0 0.0
    %562 = vmatprep.subr.mxu0 0.0
    %563 = vmatpush1.msra.mxu0 0.0
    %564 = vmatprep.subr.mxu0 0.0
    %565 = vmatpush1.msra.mxu0 0.0
    %566 = vmatprep.subr.mxu0 0.0
    %567 = vmatpush1.msra.mxu0 %v526
    %568 = vmatprep.subr.mxu0 0.0
    %569 = vmatpush1.msra.mxu0 %v525
    %570 = vmatprep.subr.mxu0 0.0
    %571 = vmatpush2.msra.mxu0 0.0
    %572 = vmatprep.subr.mxu0 0.0
    %573 = vmatpush2.msra.mxu0 0.0
    %574 = vmatprep.subr.mxu0 0.0
    %575 = vmatpush2.msra.mxu0 0.0
    %576 = vmatprep.subr.mxu0 0.0
    %577 = vmatpush2.msra.mxu0 0.0
    %578 = vmatprep.subr.mxu0 0.0
    %579 = vmatpush2.msra.mxu0 0.0
    %580 = vmatprep.subr.mxu0 0.0
    %581 = vmatpush2.msra.mxu0 0.0
    %582 = vmatprep.subr.mxu0 0.0
    %583 = vmatpush2.msra.mxu0 0.0
    %584 = vmatprep.subr.mxu0 0.0
    %585 = vmatpush2.msra.mxu0 0.0
    %586 = vmatprep.subr.mxu0 0.0
    %587 = vmatpush2.msra.mxu0 0.0
    %588 = vmatprep.subr.mxu0 0.0
    %589 = vmatpush2.msra.mxu0 0.0
    %590 = vmatprep.subr.mxu0 0.0
    %591 = vmatpush2.msra.mxu0 0.0
    %592 = vmatprep.subr.mxu0 0.0
    %593 = vmatpush2.msra.mxu0 0.0
    %594 = vmatprep.subr.mxu0 0.0
    %595 = vmatpush2.msra.mxu0 0.0
    %596 = vmatprep.subr.mxu0 0.0
    %597 = vmatpush2.msra.mxu0 0.0
    %598 = vmatprep.subr.mxu0 0.0
    %599 = vmatpush2.msra.mxu0 0.0
    %600 = vmatprep.subr.mxu0 0.0
    %601 = vmatpush2.msra.mxu0 0.0
    %602 = vmatprep.mubr.f32.mxu0 0.0
    %603 = vmatmul.mubr.f32.gmra.mxu0 %v536
    %v604 = vpop.f32.mrf.mxu0
    %v605 = vadd.f32 %v532, %v604
    %v606 = vpop.f32.mrf.mxu0
    %607 = vdwg.mxu0
    %v608 = vtanh.pop %v605
    %v609 = vld [vmem:[#allocation6] sm:$0xff]
    %v610 = vld [vmem:[#allocation6 + $0x8] sm:$0xff]
    %v611 = vld [vmem:[#allocation6 + $0x10] sm:$0xff]
    %v612 = vld [vmem:[#allocation6 + $0x18] sm:$0xff]
    %v613 = vld [vmem:[%s5] sm:$0x1]
    %v615 = vlaneseq
    %v616 = vshrl.u32 %v615, 7
    %v617 = vsub.s32 0, %v616
    %v618 = vrot.slane %v613, %v617
    %v621 = vsel %vm330, %v608, 0
    %623 = vmatprep.subr.mxu0 0.0
    %624 = vmatpush1.msra.mxu0 0.0
    %625 = vmatprep.subr.mxu0 0.0
    %626 = vmatpush1.msra.mxu0 0.0
    %627 = vmatprep.subr.mxu0 0.0
    %628 = vmatpush1.msra.mxu0 0.0
    %629 = vmatprep.subr.mxu0 0.0
    %630 = vmatpush1.msra.mxu0 0.0
    %631 = vmatprep.subr.mxu0 0.0
    %632 = vmatpush1.msra.mxu0 0.0
    %633 = vmatprep.subr.mxu0 0.0
    %634 = vmatpush1.msra.mxu0 0.0
    %635 = vmatprep.subr.mxu0 0.0
    %636 = vmatpush1.msra.mxu0 0.0
    %637 = vmatprep.subr.mxu0 0.0
    %638 = vmatpush1.msra.mxu0 0.0
    %639 = vmatprep.subr.mxu0 0.0
    %640 = vmatpush1.msra.mxu0 0.0
    %641 = vmatprep.subr.mxu0 0.0
    %642 = vmatpush1.msra.mxu0 0.0
    %643 = vmatprep.subr.mxu0 0.0
    %644 = vmatpush1.msra.mxu0 0.0
    %645 = vmatprep.subr.mxu0 0.0
    %646 = vmatpush1.msra.mxu0 0.0
    %647 = vmatprep.subr.mxu0 0.0
    %648 = vmatpush1.msra.mxu0 %v612
    %649 = vmatprep.subr.mxu0 0.0
    %650 = vmatpush1.msra.mxu0 %v611
    %651 = vmatprep.subr.mxu0 0.0
    %652 = vmatpush1.msra.mxu0 %v610
    %653 = vmatprep.subr.mxu0 0.0
    %654 = vmatpush1.msra.mxu0 %v609
    %655 = vmatprep.subr.mxu0 0.0
    %656 = vmatpush2.msra.mxu0 0.0
    %657 = vmatprep.subr.mxu0 0.0
    %658 = vmatpush2.msra.mxu0 0.0
    %659 = vmatprep.subr.mxu0 0.0
    %660 = vmatpush2.msra.mxu0 0.0
    %661 = vmatprep.subr.mxu0 0.0
    %662 = vmatpush2.msra.mxu0 0.0
    %663 = vmatprep.subr.mxu0 0.0
    %664 = vmatpush2.msra.mxu0 0.0
    %665 = vmatprep.subr.mxu0 0.0
    %666 = vmatpush2.msra.mxu0 0.0
    %667 = vmatprep.subr.mxu0 0.0
    %668 = vmatpush2.msra.mxu0 0.0
    %669 = vmatprep.subr.mxu0 0.0
    %670 = vmatpush2.msra.mxu0 0.0
    %671 = vmatprep.subr.mxu0 0.0
    %672 = vmatpush2.msra.mxu0 0.0
    %673 = vmatprep.subr.mxu0 0.0
    %674 = vmatpush2.msra.mxu0 0.0
    %675 = vmatprep.subr.mxu0 0.0
    %676 = vmatpush2.msra.mxu0 0.0
    %677 = vmatprep.subr.mxu0 0.0
    %678 = vmatpush2.msra.mxu0 0.0
    %679 = vmatprep.subr.mxu0 0.0
    %680 = vmatpush2.msra.mxu0 0.0
    %681 = vmatprep.subr.mxu0 0.0
    %682 = vmatpush2.msra.mxu0 0.0
    %683 = vmatprep.subr.mxu0 0.0
    %684 = vmatpush2.msra.mxu0 0.0
    %685 = vmatprep.subr.mxu0 0.0
    %686 = vmatpush2.msra.mxu0 0.0
    %687 = vmatprep.mubr.f32.mxu0 0.0
    %688 = vmatmul.mubr.f32.gmra.mxu0 %v621
    %v689 = vpop.f32.mrf.mxu0
    %v690 = vadd.f32 %v618, %v689
    %v691 = vpop.f32.mrf.mxu0
    %692 = vdwg.mxu0
    %s693 = sld [smem:[#allocation2]]
    %v694 = vstv %s693
    %v696 = vsel %vm330, %v690, 0
    %v699 = vsel %vm330, %v446, 0
    %v702 = vsel %vm330, %v451, 0
    %v705 = vsel %vm330, %v456, 0
    %v708 = vsel %vm330, %v461, 0
    %v711 = vsel %vm330, %v466, 0
    %v714 = vsel %vm330, %v471, 0
    %v717 = vsel %vm330, %v476, 0
    %v720 = vsel %vm330, %v481, 0
    %v723 = vsel %vm330, %v486, 0
    %v726 = vsel %vm330, %v491, 0
    %v729 = vsel %vm330, %v496, 0
    %v732 = vsel %vm330, %v501, 0
    %v735 = vsel %vm330, %v506, 0
    %v738 = vsel %vm330, %v511, 0
    %v741 = vsel %vm330, %v516, 0
    %v744 = vsel %vm330, %v521, 0
    %746 = vmatprep.subr.mxu0 0.0
    %747 = vmatpush1.xpose.msra.mxu0 %v744
    %748 = vmatprep.subr.mxu0 0.0
    %749 = vmatpush1.xpose.msra.mxu0 %v741
    %750 = vmatprep.subr.mxu0 0.0
    %751 = vmatpush1.xpose.msra.mxu0 %v738
    %752 = vmatprep.subr.mxu0 0.0
    %753 = vmatpush1.xpose.msra.mxu0 %v735
    %754 = vmatprep.subr.mxu0 0.0
    %755 = vmatpush1.xpose.msra.mxu0 %v732
    %756 = vmatprep.subr.mxu0 0.0
    %757 = vmatpush1.xpose.msra.mxu0 %v729
    %758 = vmatprep.subr.mxu0 0.0
    %759 = vmatpush1.xpose.msra.mxu0 %v726
    %760 = vmatprep.subr.mxu0 0.0
    %761 = vmatpush1.xpose.msra.mxu0 %v723
    %762 = vmatprep.subr.mxu0 0.0
    %763 = vmatpush1.xpose.msra.mxu0 %v720
    %764 = vmatprep.subr.mxu0 0.0
    %765 = vmatpush1.xpose.msra.mxu0 %v717
    %766 = vmatprep.subr.mxu0 0.0
    %767 = vmatpush1.xpose.msra.mxu0 %v714
    %768 = vmatprep.subr.mxu0 0.0
    %769 = vmatpush1.xpose.msra.mxu0 %v711
    %770 = vmatprep.subr.mxu0 0.0
    %771 = vmatpush1.xpose.msra.mxu0 %v708
    %772 = vmatprep.subr.mxu0 0.0
    %773 = vmatpush1.xpose.msra.mxu0 %v705
    %774 = vmatprep.subr.mxu0 0.0
    %775 = vmatpush1.xpose.msra.mxu0 %v702
    %776 = vmatprep.subr.mxu0 0.0
    %777 = vmatpush1.xpose.msra.mxu0 %v699
    %778 = vmatprep.subr.mxu0 0.0
    %779 = vmatpush2.xpose.msra.mxu0 0.0
    %780 = vmatprep.subr.mxu0 0.0
    %781 = vmatpush2.xpose.msra.mxu0 0.0
    %782 = vmatprep.subr.mxu0 0.0
    %783 = vmatpush2.xpose.msra.mxu0 0.0
    %784 = vmatprep.subr.mxu0 0.0
    %785 = vmatpush2.xpose.msra.mxu0 0.0
    %786 = vmatprep.subr.mxu0 0.0
    %787 = vmatpush2.xpose.msra.mxu0 0.0
    %788 = vmatprep.subr.mxu0 0.0
    %789 = vmatpush2.xpose.msra.mxu0 0.0
    %790 = vmatprep.subr.mxu0 0.0
    %791 = vmatpush2.xpose.msra.mxu0 0.0
    %792 = vmatprep.subr.mxu0 0.0
    %793 = vmatpush2.xpose.msra.mxu0 0.0
    %794 = vmatprep.subr.mxu0 0.0
    %795 = vmatpush2.xpose.msra.mxu0 0.0
    %796 = vmatprep.subr.mxu0 0.0
    %797 = vmatpush2.xpose.msra.mxu0 0.0
    %798 = vmatprep.subr.mxu0 0.0
    %799 = vmatpush2.xpose.msra.mxu0 0.0
    %800 = vmatprep.subr.mxu0 0.0
    %801 = vmatpush2.xpose.msra.mxu0 0.0
    %802 = vmatprep.subr.mxu0 0.0
    %803 = vmatpush2.xpose.msra.mxu0 0.0
    %804 = vmatprep.subr.mxu0 0.0
    %805 = vmatpush2.xpose.msra.mxu0 0.0
    %806 = vmatprep.subr.mxu0 0.0
    %807 = vmatpush2.xpose.msra.mxu0 0.0
    %808 = vmatprep.subr.mxu0 0.0
    %809 = vmatpush2.xpose.msra.mxu0 0.0
    %810 = vmatprep.mubr.f32.mxu0 0.0
    %811 = vmatmul.mubr.f32.gmra.mxu0 %v696
    %v812 = vpop.f32.mrf.mxu0
    %v813 = vadd.f32 %v694, %v812
    %v814 = vpop.f32.mrf.mxu0
    %815 = vdwg.mxu0
    %816 = vst [vmem:[#allocation9] sm:$0xff] %v813
    // Predicated region
    $region58: #{tpu_custom_call.1} parent=1 // pred_check
      _
    $region59: #{tpu_custom_call.1} parent=1 // pred_check_branch
      %818 = sbr.rel (0) target = $region61
    $region60: #{tpu_custom_call.1} parent=1 // pred_region
      %s820 = ssub.s32 128, 32
      %821 = vsyncadd [#allocation5], %s820
      %s822 = sshll.u32 [#allocation9], 4
      %s823 = int_to_ptr.vmem [resolvable:$true] %s822
      %828 = dma.vmem_to_hbm [thread:$0]  %s823, 32, %s11, [#allocation5], 32, 32, 2
    $region61: #{tpu_custom_call.1} parent=1 // pred_fallthru
      _
    // Predicated region
    $region62: #{tpu_custom_call.1} parent=1 // pred_check
      _
    $region63: #{tpu_custom_call.1} parent=1 // pred_check_branch
      %830 = sbr.rel (0) target = $region65
    $region64: #{tpu_custom_call.1} parent=1 // pred_region
      %831 = dma.done [#allocation5], 128
    $region65: #{tpu_custom_call.1} parent=1 // pred_fallthru
      _
    %832 = vsyncpa [#allocation4], 1
    %833 = vsyncpa [#allocation7], 1
    %834 = vsyncpa [#allocation5], 1

</llo_original>
